<compile_context>
chip_gen: v7x
topology: tpu7x:2x2x1
jax: 0.10.0
libtpu: 0.0.40
codegen_flags: <defaults>
</compile_context>

<pallas_src>
import math

import jax
import jax.numpy as jnp
import numpy as np
from jax.experimental import pallas as pl
from jax.experimental.pallas import tpu as pltpu

D_MODEL = 32
NUM_HEADS = 4
STAGE = 2           # stage >= 2 -> non-windowed attention branch
LN_EPS = 1e-5       # torch.nn.LayerNorm default


# --------------------------------------------------------------------------
# Fused kernel: per grid step (bpg batches at once)
#   qkv    = [x ; mem] @ [Wq*s | Wk | Wv] + b                (one MXU pass)
#   K_bd   = tile_rows(K, H) * head_mask ; V_bd likewise     (block-diagonal heads)
#   scores = q @ K_bd^T + p_tiled                            (lane-dense (N, H*M))
#   attn   = segmented softmax(scores)                       (per head, exact)
#   hidden = attn @ V_bd                                     (already 'b n (h c)')
#   out    = LayerNorm(hidden @ Wo + bo + x) * gamma + beta
# --------------------------------------------------------------------------
def _fused_rpe_layer_kernel(x_ref, mem_ref, p_ref, wqkv_ref, bqkv_ref,
                            mask_ref, bd_ref, wo_ref, bo_ref, g_ref, beta_ref,
                            out_ref, attn_ref):
    bpg, N, C = x_ref.shape
    M = mem_ref.shape[1]
    HM = p_ref.shape[2]          # = num_heads * M
    H = HM // M

    x = x_ref[...]               # (bpg, N, C)
    mem = mem_ref[...]           # (bpg, M, C)

    # ---- fused Q/K/V projection: single MXU pass over the stacked rows ----
    lhs = jnp.concatenate([x, mem], axis=1).reshape(bpg * (N + M), C)
    qkv = (jnp.dot(lhs, wqkv_ref[...], preferred_element_type=jnp.float32)
           + bqkv_ref[...])                                     # (R, 3C)
    qkv = qkv.reshape(bpg, N + M, 3 * C)
    q = qkv[:, :N, 0:C]          # (bpg, N, C)  (already scaled by 1/sqrt(c))
    k = qkv[:, N:, C:2 * C]      # (bpg, M, C)
    v = qkv[:, N:, 2 * C:3 * C]  # (bpg, M, C)

    # ---- block-diagonal head trick (no lane slicing, no head concat) ----
    hmask = mask_ref[...]                                       # (H*M, C)
    k_bd = jnp.concatenate([k] * H, axis=1) * hmask             # (bpg, H*M, C)
    v_bd = jnp.concatenate([v] * H, axis=1) * hmask             # (bpg, H*M, C)

    # scores for all heads at once, lane-dense: s[b, n, h*M + m]
    s = jax.lax.dot_general(q, k_bd, (((2,), (2,)), ((0,), (0,))),
                            preferred_element_type=jnp.float32)  # (bpg, N, H*M)
    s = s + p_ref[...]            # positional bias, pre-scaled & head-tiled

    # Segmented softmax.  The per-row max is uniform across every head segment,
    # so subtracting it leaves each head's softmax mathematically unchanged.
    mx = jnp.max(s, axis=-1, keepdims=True)
    ex = jnp.exp(s - mx)
    denom = jnp.dot(ex.reshape(bpg * N, HM), bd_ref[...],
                    preferred_element_type=jnp.float32).reshape(bpg, N, HM)
    attn = ex * pl.reciprocal(denom, approx=False)              # (bpg, N, H*M)
    attn_ref[...] = attn          # one lane-dense bulk store

    # attn @ V_bd for all heads at once -> already in 'b n (h c)' layout.
    hidden = jax.lax.dot_general(attn, v_bd, (((2,), (1,)), ((0,), (0,))),
                                 preferred_element_type=jnp.float32)  # (bpg, N, C)

    # ---- output projection + residual + LayerNorm ----
    y = (jnp.dot(hidden.reshape(bpg * N, C), wo_ref[...],
                 preferred_element_type=jnp.float32) + bo_ref[...])
    z = y.reshape(bpg, N, C) + x
    mu = jnp.mean(z, axis=-1, keepdims=True)
    zc = z - mu
    var = jnp.mean(zc * zc, axis=-1, keepdims=True)
    out_ref[...] = zc * jax.lax.rsqrt(var + LN_EPS) * g_ref[...] + beta_ref[...]


def _num_parallel_cores():
    # v4 / v5p / v7x expose 2 TensorCores per JAX device; v5e / v6e have 1.
    try:
        kind = jax.devices()[0].device_kind.lower()
    except Exception:
        return 1
    return 2 if any(t in kind for t in ("v7", "v4", "v5p")) else 1


# --------------------------------------------------------------------------
# RPEAttentionLayer forward
# --------------------------------------------------------------------------
def rpe_attention_layer(params, input_states, memory_states, position_states):
    B, N, C = input_states.shape
    M = memory_states.shape[1]
    H = NUM_HEADS
    c = C // H
    HM = H * M
    scale = 1.0 / math.sqrt(c)

    # Head-independent relative positional bias, pre-scaled by 1/sqrt(c) and
    # tiled to the lane-dense (B, N, H*M) layout used inside the kernel.
    e = position_states[STAGE]                                          # (B, N, M, 3)
    pbias = (jnp.einsum("bnmk,k->bnm", e, params["wp"]) + params["bp"][0]) * scale
    pbias = jnp.tile(pbias, (1, 1, H))                                  # (B, N, H*M)

    # Fused projection weights; 1/sqrt(c) folded into the Q branch.
    wqkv = jnp.concatenate(
        [params["wq_t"] * scale, params["wk_t"], params["wv_t"]], axis=1)   # (C, 3C)
    bqkv = jnp.concatenate(
        [params["bq"] * scale, params["bk"], params["bv"]], axis=1)         # (1, 3C)

    # Block-diagonal head masks (host constants).
    head_of_col = np.arange(C) // c                 # channel index  -> head
    head_of_row = np.arange(HM) // M                # (h*M + m) row  -> head
    hmask = jnp.asarray(
        (head_of_row[:, None] == head_of_col[None, :]).astype(np.float32))   # (HM, C)
    bd_ones = jnp.asarray(
        (head_of_row[:, None] == head_of_row[None, :]).astype(np.float32))   # (HM, HM)

    # Grid: whole batch in one step on 1-TC chips; batch-parallel on 2-TC chips.
    G = 2 if (_num_parallel_cores() == 2 and B % 2 == 0) else 1
    bpg = B // G

    out, attn_raw = pl.pallas_call(
        _fused_rpe_layer_kernel,
        out_shape=(jax.ShapeDtypeStruct((B, N, C), jnp.float32),
                   jax.ShapeDtypeStruct((B, N, HM), jnp.float32)),
        grid=(G,),
        in_specs=[
            pl.BlockSpec((bpg, N, C), lambda g: (g, 0, 0)),      # input_states
            pl.BlockSpec((bpg, M, C), lambda g: (g, 0, 0)),      # memory_states
            pl.BlockSpec((bpg, N, HM), lambda g: (g, 0, 0)),     # positional bias (tiled)
            pl.BlockSpec((C, 3 * C), lambda g: (0, 0)),          # [Wq*s | Wk | Wv]
            pl.BlockSpec((1, 3 * C), lambda g: (0, 0)),          # [bq*s | bk | bv]
            pl.BlockSpec((HM, C), lambda g: (0, 0)),             # head mask
            pl.BlockSpec((HM, HM), lambda g: (0, 0)),            # block-diag ones
            pl.BlockSpec((C, C), lambda g: (0, 0)),              # Wo^T
            pl.BlockSpec((1, C), lambda g: (0, 0)),              # bo
            pl.BlockSpec((1, C), lambda g: (0, 0)),              # LN gamma
            pl.BlockSpec((1, C), lambda g: (0, 0)),              # LN beta
        ],
        out_specs=(
            pl.BlockSpec((bpg, N, C), lambda g: (g, 0, 0)),      # output_states
            pl.BlockSpec((bpg, N, HM), lambda g: (g, 0, 0)),     # attention (lane-dense)
        ),
        compiler_params=pltpu.CompilerParams(
            dimension_semantics=("parallel",),
            vmem_limit_bytes=32 * 1024 * 1024),
    )(input_states, memory_states, pbias, wqkv, bqkv, hmask, bd_ones,
      params["wo_t"], params["bo"], params["gamma"], params["beta"])

    # (B, N, H*M) -> (B, H, N, M): tiny wrapper-side relayout of the scores.
    attn = attn_raw.reshape(B, N, H, M).transpose(0, 2, 1, 3)
    return out, attn


# --------------------------------------------------------------------------
# Pure-JAX reference (same math, no Pallas) for a sanity check
# --------------------------------------------------------------------------
def reference(params, input_states, memory_states, position_states):
    B, N, C = input_states.shape
    M = memory_states.shape[1]
    H = NUM_HEADS
    c = C // H
    q = (input_states @ params["wq_t"] + params["bq"]).reshape(B, N, H, c).transpose(0, 2, 1, 3)
    k = (memory_states @ params["wk_t"] + params["bk"]).reshape(B, M, H, c).transpose(0, 2, 1, 3)
    v = (memory_states @ params["wv_t"] + params["bv"]).reshape(B, M, H, c).transpose(0, 2, 1, 3)
    e = position_states[STAGE]                                    # (B, N, M, 3)
    p = (e @ params["wp"].reshape(3, 1) + params["bp"])[..., 0]   # (B, N, M)
    s = jnp.einsum("bhnc,bhmc->bhnm", q, k)
    s = (s + p[:, None, :, :]) / (c ** 0.5)
    attn = jax.nn.softmax(s, axis=-1)
    hid = jnp.einsum("bhnm,bhmc->bhnc", attn, v)
    hidden = hid.transpose(0, 2, 1, 3).reshape(B, N, C)
    y = hidden @ params["wo_t"] + params["bo"]
    z = y + input_states
    mu = jnp.mean(z, axis=-1, keepdims=True)
    var = jnp.mean((z - mu) ** 2, axis=-1, keepdims=True)
    out = (z - mu) * jax.lax.rsqrt(var + LN_EPS) * params["gamma"] + params["beta"]
    return out, attn


# --------------------------------------------------------------------------
def init_params(key, d_model):
    ks = jax.random.split(key, 12)
    s = 1.0 / np.sqrt(d_model)

    def lin(kw, kb):
        w_t = jax.random.normal(kw, (d_model, d_model), jnp.float32) * s   # (C_in, C_out)
        b = jax.random.normal(kb, (1, d_model), jnp.float32) * s
        return w_t, b

    wq_t, bq = lin(ks[0], ks[1])
    wk_t, bk = lin(ks[2], ks[3])
    wv_t, bv = lin(ks[4], ks[5])
    wo_t, bo = lin(ks[6], ks[7])
    wp = jax.random.normal(ks[8], (3,), jnp.float32) * (1.0 / np.sqrt(3.0))
    bp = jax.random.normal(ks[9], (1,), jnp.float32) * (1.0 / np.sqrt(3.0))
    gamma = jnp.ones((1, d_model), jnp.float32)    # LayerNorm default init
    beta = jnp.zeros((1, d_model), jnp.float32)
    return dict(wq_t=wq_t, bq=bq, wk_t=wk_t, bk=bk, wv_t=wv_t, bv=bv,
                wo_t=wo_t, bo=bo, wp=wp, bp=bp, gamma=gamma, beta=beta)


if __name__ == "__main__":
    B, N, M = 2, 8, 8
    key = jax.random.PRNGKey(0)
    k_par, k_in, k_mem, k_pos = jax.random.split(key, 4)

    params = init_params(k_par, D_MODEL)
    input_states = jax.random.normal(k_in, (B, N, D_MODEL), jnp.float32)
    memory_states = jax.random.normal(k_mem, (B, M, D_MODEL), jnp.float32)
    # stage-indexed relative positional embedding, (S, B, N, M, 3)
    position_states = jax.random.normal(k_pos, (STAGE + 1, B, N, M, 3), jnp.float32)

    out, attn = rpe_attention_layer(params, input_states, memory_states, position_states)
    out = jax.block_until_ready(out)
    attn = jax.block_until_ready(attn)

    ref_out, ref_attn = reference(params, input_states, memory_states, position_states)
    np.testing.assert_allclose(np.asarray(out), np.asarray(ref_out), rtol=1e-3, atol=1e-3)
    np.testing.assert_allclose(np.asarray(attn), np.asarray(ref_attn), rtol=1e-3, atol=1e-3)

    print("KERNEL_OK")
</pallas_src>

<mosaic_0001>
module attributes {stable_mosaic.version = 11 : i64} {
  func.func @_fused_rpe_layer_kernel(%arg0: i32, %arg1: memref<2x8x32xf32, #tpu.memory_space<vmem>>, %arg2: memref<2x8x32xf32, #tpu.memory_space<vmem>>, %arg3: memref<2x8x32xf32, #tpu.memory_space<vmem>>, %arg4: memref<32x96xf32, #tpu.memory_space<vmem>>, %arg5: memref<1x96xf32, #tpu.memory_space<vmem>>, %arg6: memref<32x32xf32, #tpu.memory_space<vmem>>, %arg7: memref<32x32xf32, #tpu.memory_space<vmem>>, %arg8: memref<32x32xf32, #tpu.memory_space<vmem>>, %arg9: memref<1x32xf32, #tpu.memory_space<vmem>>, %arg10: memref<1x32xf32, #tpu.memory_space<vmem>>, %arg11: memref<1x32xf32, #tpu.memory_space<vmem>>, %arg12: memref<2x8x32xf32, #tpu.memory_space<vmem>>, %arg13: memref<2x8x32xf32, #tpu.memory_space<vmem>>) attributes {dimension_semantics = [#tpu.dimension_semantics<parallel>], iteration_bounds = array<i64: 1>, scalar_prefetch = 0 : i64, scratch_operands = 0 : i64, tpu.core_type = #tpu.core_type<tc>, window_params = [{transform_indices = @transform_0, window_bounds = array<i64: 2, 8, 32>}, {transform_indices = @transform_1, window_bounds = array<i64: 2, 8, 32>}, {transform_indices = @transform_2, window_bounds = array<i64: 2, 8, 32>}, {pipeline_mode = #tpu.pipeline_mode<synchronous>, transform_indices = @transform_3, window_bounds = array<i64: 32, 96>}, {pipeline_mode = #tpu.pipeline_mode<synchronous>, transform_indices = @transform_4, window_bounds = array<i64: 1, 96>}, {pipeline_mode = #tpu.pipeline_mode<synchronous>, transform_indices = @transform_5, window_bounds = array<i64: 32, 32>}, {pipeline_mode = #tpu.pipeline_mode<synchronous>, transform_indices = @transform_6, window_bounds = array<i64: 32, 32>}, {pipeline_mode = #tpu.pipeline_mode<synchronous>, transform_indices = @transform_7, window_bounds = array<i64: 32, 32>}, {pipeline_mode = #tpu.pipeline_mode<synchronous>, transform_indices = @transform_8, window_bounds = array<i64: 1, 32>}, {pipeline_mode = #tpu.pipeline_mode<synchronous>, transform_indices = @transform_9, window_bounds = array<i64: 1, 32>}, {pipeline_mode = #tpu.pipeline_mode<synchronous>, transform_indices = @transform_10, window_bounds = array<i64: 1, 32>}, {transform_indices = @transform_11, window_bounds = array<i64: 2, 8, 32>}, {transform_indices = @transform_12, window_bounds = array<i64: 2, 8, 32>}]} {
    %c0 = arith.constant 0 : index
    %c0_0 = arith.constant 0 : index
    %c0_1 = arith.constant 0 : index
    %0 = vector.load %arg1[%c0, %c0_0, %c0_1] : memref<2x8x32xf32, #tpu.memory_space<vmem>>, vector<2x8x32xf32>
    %c0_2 = arith.constant 0 : index
    %c0_3 = arith.constant 0 : index
    %c0_4 = arith.constant 0 : index
    %1 = vector.load %arg2[%c0_2, %c0_3, %c0_4] : memref<2x8x32xf32, #tpu.memory_space<vmem>>, vector<2x8x32xf32>
    %2 = tpu.concatenate %0, %1 in 1 : vector<2x8x32xf32>, vector<2x8x32xf32> -> vector<2x16x32xf32>
    %3 = vector.shape_cast %2 : vector<2x16x32xf32> to vector<32x32xf32>
    %c0_5 = arith.constant 0 : index
    %c0_6 = arith.constant 0 : index
    %4 = vector.load %arg4[%c0_5, %c0_6] : memref<32x96xf32, #tpu.memory_space<vmem>>, vector<32x96xf32>
    %cst = arith.constant dense<0.000000e+00> : vector<32x96xf32>
    %5 = tpu.matmul %3, %4, %cst {dimension_numbers = #tpu.dot_dimension_numbers<[1], [0], [0], [1], [0, 0, 1, 1], [], []>} : vector<32x32xf32>, vector<32x96xf32>, vector<32x96xf32> -> vector<32x96xf32>
    %c0_7 = arith.constant 0 : index
    %c0_8 = arith.constant 0 : index
    %6 = vector.load %arg5[%c0_7, %c0_8] : memref<1x96xf32, #tpu.memory_space<vmem>>, vector<1x96xf32>
    %7 = vector.broadcast %6 : vector<1x96xf32> to vector<32x96xf32>
    %8 = arith.addf %5, %7 : vector<32x96xf32>
    %9 = vector.shape_cast %8 : vector<32x96xf32> to vector<2x16x96xf32>
    %10 = vector.extract_strided_slice %9 {offsets = [0, 0, 0], sizes = [2, 8, 32], strides = [1, 1, 1]} : vector<2x16x96xf32> to vector<2x8x32xf32>
    %11 = vector.extract_strided_slice %9 {offsets = [0, 8, 32], sizes = [2, 8, 32], strides = [1, 1, 1]} : vector<2x16x96xf32> to vector<2x8x32xf32>
    %12 = vector.extract_strided_slice %9 {offsets = [0, 8, 64], sizes = [2, 8, 32], strides = [1, 1, 1]} : vector<2x16x96xf32> to vector<2x8x32xf32>
    %c0_9 = arith.constant 0 : index
    %c0_10 = arith.constant 0 : index
    %13 = vector.load %arg6[%c0_9, %c0_10] : memref<32x32xf32, #tpu.memory_space<vmem>>, vector<32x32xf32>
    %14 = tpu.concatenate %11, %11, %11, %11 in 1 : vector<2x8x32xf32>, vector<2x8x32xf32>, vector<2x8x32xf32>, vector<2x8x32xf32> -> vector<2x32x32xf32>
    %15 = vector.shape_cast %13 : vector<32x32xf32> to vector<1x32x32xf32>
    %16 = vector.broadcast %15 : vector<1x32x32xf32> to vector<2x32x32xf32>
    %17 = arith.mulf %14, %16 : vector<2x32x32xf32>
    %18 = tpu.concatenate %12, %12, %12, %12 in 1 : vector<2x8x32xf32>, vector<2x8x32xf32>, vector<2x8x32xf32>, vector<2x8x32xf32> -> vector<2x32x32xf32>
    %19 = vector.shape_cast %13 : vector<32x32xf32> to vector<1x32x32xf32>
    %20 = vector.broadcast %19 : vector<1x32x32xf32> to vector<2x32x32xf32>
    %21 = arith.mulf %18, %20 : vector<2x32x32xf32>
    %cst_11 = arith.constant dense<0.000000e+00> : vector<2x8x32xf32>
    %22 = tpu.matmul %10, %17, %cst_11 {dimension_numbers = #tpu.dot_dimension_numbers<[2], [2], [1], [1], [0, 0, 0, 1, 1, 1], [0], [0]>} : vector<2x8x32xf32>, vector<2x32x32xf32>, vector<2x8x32xf32> -> vector<2x8x32xf32>
    %c0_12 = arith.constant 0 : index
    %c0_13 = arith.constant 0 : index
    %c0_14 = arith.constant 0 : index
    %23 = vector.load %arg3[%c0_12, %c0_13, %c0_14] : memref<2x8x32xf32, #tpu.memory_space<vmem>>, vector<2x8x32xf32>
    %24 = arith.addf %22, %23 : vector<2x8x32xf32>
    %cst_15 = arith.constant dense<0xFF800000> : vector<2x8xf32>
    %25 = vector.multi_reduction <maximumf>, %24, %cst_15 [2] : vector<2x8x32xf32> to vector<2x8xf32>
    %26 = vector.shape_cast %25 : vector<2x8xf32> to vector<2x8x1xf32>
    %27 = vector.broadcast %26 : vector<2x8x1xf32> to vector<2x8x32xf32>
    %28 = arith.subf %24, %27 : vector<2x8x32xf32>
    %29 = math.exp %28 : vector<2x8x32xf32>
    %30 = vector.shape_cast %29 : vector<2x8x32xf32> to vector<16x32xf32>
    %c0_16 = arith.constant 0 : index
    %c0_17 = arith.constant 0 : index
    %31 = vector.load %arg7[%c0_16, %c0_17] : memref<32x32xf32, #tpu.memory_space<vmem>>, vector<32x32xf32>
    %cst_18 = arith.constant dense<0.000000e+00> : vector<16x32xf32>
    %32 = tpu.matmul %30, %31, %cst_18 {dimension_numbers = #tpu.dot_dimension_numbers<[1], [0], [0], [1], [0, 0, 1, 1], [], []>} : vector<16x32xf32>, vector<32x32xf32>, vector<16x32xf32> -> vector<16x32xf32>
    %33 = vector.shape_cast %32 : vector<16x32xf32> to vector<2x8x32xf32>
    %34 = tpu.reciprocal %33 : vector<2x8x32xf32> -> vector<2x8x32xf32>
    %35 = arith.mulf %29, %34 : vector<2x8x32xf32>
    %c0_19 = arith.constant 0 : index
    %c0_20 = arith.constant 0 : index
    %c0_21 = arith.constant 0 : index
    %36 = vector.load %arg13[%c0_19, %c0_20, %c0_21] : memref<2x8x32xf32, #tpu.memory_space<vmem>>, vector<2x8x32xf32>
    tpu.vector_store %arg13[%c0_19, %c0_20, %c0_21], %35 {strides = array<i32>} : memref<2x8x32xf32, #tpu.memory_space<vmem>>, vector<2x8x32xf32>,
    %cst_22 = arith.constant dense<0.000000e+00> : vector<2x8x32xf32>
    %37 = tpu.matmul %35, %21, %cst_22 {dimension_numbers = #tpu.dot_dimension_numbers<[2], [1], [1], [2], [0, 0, 0, 1, 1, 2], [0], [0]>} : vector<2x8x32xf32>, vector<2x32x32xf32>, vector<2x8x32xf32> -> vector<2x8x32xf32>
    %38 = vector.shape_cast %37 : vector<2x8x32xf32> to vector<16x32xf32>
    %c0_23 = arith.constant 0 : index
    %c0_24 = arith.constant 0 : index
    %39 = vector.load %arg8[%c0_23, %c0_24] : memref<32x32xf32, #tpu.memory_space<vmem>>, vector<32x32xf32>
    %cst_25 = arith.constant dense<0.000000e+00> : vector<16x32xf32>
    %40 = tpu.matmul %38, %39, %cst_25 {dimension_numbers = #tpu.dot_dimension_numbers<[1], [0], [0], [1], [0, 0, 1, 1], [], []>} : vector<16x32xf32>, vector<32x32xf32>, vector<16x32xf32> -> vector<16x32xf32>
    %c0_26 = arith.constant 0 : index
    %c0_27 = arith.constant 0 : index
    %41 = vector.load %arg9[%c0_26, %c0_27] : memref<1x32xf32, #tpu.memory_space<vmem>>, vector<1x32xf32>
    %42 = vector.broadcast %41 : vector<1x32xf32> to vector<16x32xf32>
    %43 = arith.addf %40, %42 : vector<16x32xf32>
    %44 = vector.shape_cast %43 : vector<16x32xf32> to vector<2x8x32xf32>
    %45 = arith.addf %44, %0 : vector<2x8x32xf32>
    %cst_28 = arith.constant dense<0.000000e+00> : vector<2x8xf32>
    %46 = vector.multi_reduction <add>, %45, %cst_28 [2] : vector<2x8x32xf32> to vector<2x8xf32>
    %47 = vector.shape_cast %46 : vector<2x8xf32> to vector<2x8x1xf32>
    %cst_29 = arith.constant 3.200000e+01 : f32
    %48 = vector.broadcast %cst_29 : f32 to vector<2x8x1xf32>
    %49 = arith.divf %47, %48 : vector<2x8x1xf32>
    %50 = vector.broadcast %49 : vector<2x8x1xf32> to vector<2x8x32xf32>
    %51 = arith.subf %45, %50 : vector<2x8x32xf32>
    %52 = arith.mulf %51, %51 : vector<2x8x32xf32>
    %cst_30 = arith.constant dense<0.000000e+00> : vector<2x8xf32>
    %53 = vector.multi_reduction <add>, %52, %cst_30 [2] : vector<2x8x32xf32> to vector<2x8xf32>
    %54 = vector.shape_cast %53 : vector<2x8xf32> to vector<2x8x1xf32>
    %cst_31 = arith.constant 3.200000e+01 : f32
    %55 = vector.broadcast %cst_31 : f32 to vector<2x8x1xf32>
    %56 = arith.divf %54, %55 : vector<2x8x1xf32>
    %cst_32 = arith.constant 9.99999974E-6 : f32
    %57 = vector.broadcast %cst_32 : f32 to vector<2x8x1xf32>
    %58 = arith.addf %56, %57 : vector<2x8x1xf32>
    %59 = math.rsqrt %58 : vector<2x8x1xf32>
    %60 = vector.broadcast %59 : vector<2x8x1xf32> to vector<2x8x32xf32>
    %61 = arith.mulf %51, %60 : vector<2x8x32xf32>
    %c0_33 = arith.constant 0 : index
    %c0_34 = arith.constant 0 : index
    %62 = vector.load %arg10[%c0_33, %c0_34] : memref<1x32xf32, #tpu.memory_space<vmem>>, vector<1x32xf32>
    %63 = vector.shape_cast %62 : vector<1x32xf32> to vector<1x1x32xf32>
    %64 = vector.broadcast %63 : vector<1x1x32xf32> to vector<2x8x32xf32>
    %65 = arith.mulf %61, %64 : vector<2x8x32xf32>
    %c0_35 = arith.constant 0 : index
    %c0_36 = arith.constant 0 : index
    %66 = vector.load %arg11[%c0_35, %c0_36] : memref<1x32xf32, #tpu.memory_space<vmem>>, vector<1x32xf32>
    %67 = vector.shape_cast %66 : vector<1x32xf32> to vector<1x1x32xf32>
    %68 = vector.broadcast %67 : vector<1x1x32xf32> to vector<2x8x32xf32>
    %69 = arith.addf %65, %68 : vector<2x8x32xf32>
    %c0_37 = arith.constant 0 : index
    %c0_38 = arith.constant 0 : index
    %c0_39 = arith.constant 0 : index
    %70 = vector.load %arg12[%c0_37, %c0_38, %c0_39] : memref<2x8x32xf32, #tpu.memory_space<vmem>>, vector<2x8x32xf32>
    tpu.vector_store %arg12[%c0_37, %c0_38, %c0_39], %69 {strides = array<i32>} : memref<2x8x32xf32, #tpu.memory_space<vmem>>, vector<2x8x32xf32>,
    return
  }
  func.func @transform_0(%arg0: i32) -> (i32, i32, i32) {
    %c0_i32 = arith.constant 0 : i32
    %c0_i32_0 = arith.constant 0 : i32
    %c0_i32_1 = arith.constant 0 : i32
    return %arg0, %c0_i32, %c0_i32_0 : i32, i32, i32
  }
  func.func @transform_1(%arg0: i32) -> (i32, i32, i32) {
    %c0_i32 = arith.constant 0 : i32
    %c0_i32_0 = arith.constant 0 : i32
    %c0_i32_1 = arith.constant 0 : i32
    return %arg0, %c0_i32, %c0_i32_0 : i32, i32, i32
  }
  func.func @transform_2(%arg0: i32) -> (i32, i32, i32) {
    %c0_i32 = arith.constant 0 : i32
    %c0_i32_0 = arith.constant 0 : i32
    %c0_i32_1 = arith.constant 0 : i32
    return %arg0, %c0_i32, %c0_i32_0 : i32, i32, i32
  }
  func.func @transform_3(%arg0: i32) -> (i32, i32) {
    %c0_i32 = arith.constant 0 : i32
    %c0_i32_0 = arith.constant 0 : i32
    %c0_i32_1 = arith.constant 0 : i32
    return %c0_i32, %c0_i32_0 : i32, i32
  }
  func.func @transform_4(%arg0: i32) -> (i32, i32) {
    %c0_i32 = arith.constant 0 : i32
    %c0_i32_0 = arith.constant 0 : i32
    %c0_i32_1 = arith.constant 0 : i32
    return %c0_i32, %c0_i32_0 : i32, i32
  }
  func.func @transform_5(%arg0: i32) -> (i32, i32) {
    %c0_i32 = arith.constant 0 : i32
    %c0_i32_0 = arith.constant 0 : i32
    %c0_i32_1 = arith.constant 0 : i32
    return %c0_i32, %c0_i32_0 : i32, i32
  }
  func.func @transform_6(%arg0: i32) -> (i32, i32) {
    %c0_i32 = arith.constant 0 : i32
    %c0_i32_0 = arith.constant 0 : i32
    %c0_i32_1 = arith.constant 0 : i32
    return %c0_i32, %c0_i32_0 : i32, i32
  }
  func.func @transform_7(%arg0: i32) -> (i32, i32) {
    %c0_i32 = arith.constant 0 : i32
    %c0_i32_0 = arith.constant 0 : i32
    %c0_i32_1 = arith.constant 0 : i32
    return %c0_i32, %c0_i32_0 : i32, i32
  }
  func.func @transform_8(%arg0: i32) -> (i32, i32) {
    %c0_i32 = arith.constant 0 : i32
    %c0_i32_0 = arith.constant 0 : i32
    %c0_i32_1 = arith.constant 0 : i32
    return %c0_i32, %c0_i32_0 : i32, i32
  }
  func.func @transform_9(%arg0: i32) -> (i32, i32) {
    %c0_i32 = arith.constant 0 : i32
    %c0_i32_0 = arith.constant 0 : i32
    %c0_i32_1 = arith.constant 0 : i32
    return %c0_i32, %c0_i32_0 : i32, i32
  }
  func.func @transform_10(%arg0: i32) -> (i32, i32) {
    %c0_i32 = arith.constant 0 : i32
    %c0_i32_0 = arith.constant 0 : i32
    %c0_i32_1 = arith.constant 0 : i32
    return %c0_i32, %c0_i32_0 : i32, i32
  }
  func.func @transform_11(%arg0: i32) -> (i32, i32, i32) {
    %c0_i32 = arith.constant 0 : i32
    %c0_i32_0 = arith.constant 0 : i32
    %c0_i32_1 = arith.constant 0 : i32
    return %arg0, %c0_i32, %c0_i32_0 : i32, i32, i32
  }
  func.func @transform_12(%arg0: i32) -> (i32, i32, i32) {
    %c0_i32 = arith.constant 0 : i32
    %c0_i32_0 = arith.constant 0 : i32
    %c0_i32_1 = arith.constant 0 : i32
    return %arg0, %c0_i32, %c0_i32_0 : i32, i32, i32
  }
}

</mosaic_0001>

<llo_original>
// kernel: tpu_custom_call.1
$region0: #{tpu_custom_call.1}
  #allocation0 [shape = 'u32[]', space=smem, size = 0x4, offset = 0x4, fixed_abs, tag = 'smem constant byte address 0x4 - core index']
  #allocation1 [shape = 'u32[144,128]{1,0:T(1,128)}', space=vmem, size = 0x12000, scoped, tag = 'internal scratch']
  %s0 = inlined_call_operand.hbm [shape: f32[2,8,32], index: 0, kind: input, shape index: {}]
  %s1 = inlined_call_operand.hbm [shape: f32[2,8,32], index: 1, kind: input, shape index: {}]
  %s2 = inlined_call_operand.hbm [shape: f32[2,8,32], index: 2, kind: input, shape index: {}]
  %s3 = inlined_call_operand.hbm [shape: f32[32,96], index: 3, kind: input, shape index: {}]
  %s4 = inlined_call_operand.vmem [shape: f32[1,96], index: 4, kind: input, shape index: {}]
  %s5 = inlined_call_operand.hbm [shape: f32[32,32], index: 5, kind: input, shape index: {}]
  %s6 = inlined_call_operand.hbm [shape: f32[32,32], index: 6, kind: input, shape index: {}]
  %s7 = inlined_call_operand.hbm [shape: f32[32,32], index: 7, kind: input, shape index: {}]
  %s8 = inlined_call_operand.vmem [shape: f32[1,32], index: 8, kind: input, shape index: {}]
  %s9 = inlined_call_operand.vmem [shape: f32[1,32], index: 9, kind: input, shape index: {}]
  %s10 = inlined_call_operand.vmem [shape: f32[1,32], index: 10, kind: input, shape index: {}]
  %s11 = inlined_call_operand.hbm [shape: f32[2,8,32], index: 11, kind: output, shape index: {0}]
  %s12 = inlined_call_operand.hbm [shape: f32[2,8,32], index: 12, kind: output, shape index: {1}]
  %13 = xla_tuple %s11, %s12
  %s14 = sld [smem:[#allocation0]]
  $region90: #{tpu_custom_call.1} parent=0
    _
  %s16 = ssub.s32 1, %s14
  %s17 = scalar_select 0, %s16, %s14
  $region1: #{tpu_custom_call.1} parent=0
    #allocation2 [shape = 'u8[8192]{0}', space=vmem, size = 0x2000, scoped, tag = 'input window, operand 0, single buffered']
    #allocation3 [shape = 's32[1]{0}', space=sflag, size = 0x4, scoped, tag = 'scoped memory for tpu_custom_call.1']
    #allocation4 [shape = 's32[1]{0}', space=sflag, size = 0x4, scoped, tag = 'scoped memory for tpu_custom_call.1']
    #allocation5 [shape = 'u8[8192]{0}', space=vmem, size = 0x2000, scoped, tag = 'input window, operand 1, single buffered']
    #allocation6 [shape = 's32[1]{0}', space=sflag, size = 0x4, scoped, tag = 'scoped memory for tpu_custom_call.1']
    #allocation7 [shape = 'u8[8192]{0}', space=vmem, size = 0x2000, scoped, tag = 'input window, operand 2, single buffered']
    #allocation8 [shape = 'u8[16384]{0}', space=vmem, size = 0x4000, scoped, tag = 'input window, operand 3, single buffered']
    #allocation9 [shape = 's32[1]{0}', space=sflag, size = 0x4, scoped, tag = 'scoped memory for tpu_custom_call.1']
    #allocation10 [shape = 'u8[16384]{0}', space=vmem, size = 0x4000, scoped, tag = 'input window, operand 5, single buffered']
    #allocation11 [shape = 'u8[16384]{0}', space=vmem, size = 0x4000, scoped, tag = 'input window, operand 6, single buffered']
    #allocation12 [shape = 's32[1]{0}', space=sflag, size = 0x4, scoped, tag = 'scoped memory for tpu_custom_call.1']
    #allocation13 [shape = 'u8[16384]{0}', space=vmem, size = 0x4000, scoped, tag = 'input window, operand 7, single buffered']
    #allocation14 [shape = 'u8[8192]{0}', space=vmem, size = 0x2000, scoped, tag = 'output window, operand 0, single buffered']
    #allocation15 [shape = 'u8[8192]{0}', space=vmem, size = 0x2000, scoped, tag = 'output window, operand 1, single buffered']
    #allocation16 [shape = 's32[1]{0}', space=sflag, size = 0x4, scoped, tag = 'scoped memory for tpu_custom_call.1']
    %18 = vsyncpa [#allocation3], 0
    %19 = vsyncpa [#allocation6], 0
    %20 = vsyncpa [#allocation9], 0
    %21 = vsyncpa [#allocation12], 0
    %22 = vsyncpa [#allocation4], 0
    %23 = vsyncpa [#allocation16], 0
    // Predicated region
    $region2: #{tpu_custom_call.1} parent=1 // pred_check
      _
    $region3: #{tpu_custom_call.1} parent=1 // pred_check_branch
      %25 = sbr.rel (0) target = $region5
    $region4: #{tpu_custom_call.1} parent=1 // pred_region
      %s27 = ssub.s32 256, 256
      %28 = vsyncadd [#allocation3], %s27
      %s29 = sshll.u32 [#allocation2], 4
      %s30 = int_to_ptr.vmem [resolvable:$true] %s29
      %35 = dma.hbm_to_vmem [thread:$0]  %s0, 256, %s30, [#allocation3], 128, 128, 8
    $region5: #{tpu_custom_call.1} parent=1 // pred_fallthru
      _
    // Predicated region
    $region6: #{tpu_custom_call.1} parent=1 // pred_check
      _
    $region7: #{tpu_custom_call.1} parent=1 // pred_check_branch
      %37 = sbr.rel (0) target = $region9
    $region8: #{tpu_custom_call.1} parent=1 // pred_region
      %s39 = ssub.s32 256, 256
      %40 = vsyncadd [#allocation6], %s39
      %s41 = sshll.u32 [#allocation5], 4
      %s42 = int_to_ptr.vmem [resolvable:$true] %s41
      %47 = dma.hbm_to_vmem [thread:$0]  %s1, 256, %s42, [#allocation6], 128, 128, 8
    $region9: #{tpu_custom_call.1} parent=1 // pred_fallthru
      _
    // Predicated region
    $region10: #{tpu_custom_call.1} parent=1 // pred_check
      _
    $region11: #{tpu_custom_call.1} parent=1 // pred_check_branch
      %49 = sbr.rel (0) target = $region13
    $region12: #{tpu_custom_call.1} parent=1 // pred_region
      %s51 = ssub.s32 256, 256
      %52 = vsyncadd [#allocation6], %s51
      %s53 = sshll.u32 [#allocation7], 4
      %s54 = int_to_ptr.vmem [resolvable:$true] %s53
      %59 = dma.hbm_to_vmem [thread:$0]  %s2, 256, %s54, [#allocation6], 128, 128, 8
    $region13: #{tpu_custom_call.1} parent=1 // pred_fallthru
      _
    // Predicated region
    $region14: #{tpu_custom_call.1} parent=1 // pred_check
      _
    $region15: #{tpu_custom_call.1} parent=1 // pred_check_branch
      %61 = sbr.rel (0) target = $region17
    $region16: #{tpu_custom_call.1} parent=1 // pred_region
      %s63 = ssub.s32 512, 512
      %64 = vsyncadd [#allocation9], %s63
      %s65 = sshll.u32 [#allocation8], 4
      %s66 = int_to_ptr.vmem [resolvable:$true] %s65
      %71 = dma.hbm_to_vmem [thread:$0]  %s3, 512, %s66, [#allocation9], 128, 128, 8
    $region17: #{tpu_custom_call.1} parent=1 // pred_fallthru
      _
    // Predicated region
    $region18: #{tpu_custom_call.1} parent=1 // pred_check
      _
    $region19: #{tpu_custom_call.1} parent=1 // pred_check_branch
      %73 = sbr.rel (0) target = $region21
    $region20: #{tpu_custom_call.1} parent=1 // pred_region
      _
    $region21: #{tpu_custom_call.1} parent=1 // pred_fallthru
      _
    // Predicated region
    $region22: #{tpu_custom_call.1} parent=1 // pred_check
      _
    $region23: #{tpu_custom_call.1} parent=1 // pred_check_branch
      %75 = sbr.rel (0) target = $region25
    $region24: #{tpu_custom_call.1} parent=1 // pred_region
      %s77 = ssub.s32 512, 512
      %78 = vsyncadd [#allocation9], %s77
      %s79 = sshll.u32 [#allocation10], 4
      %s80 = int_to_ptr.vmem [resolvable:$true] %s79
      %85 = dma.hbm_to_vmem [thread:$0]  %s5, 512, %s80, [#allocation9], 128, 128, 8
    $region25: #{tpu_custom_call.1} parent=1 // pred_fallthru
      _
    // Predicated region
    $region26: #{tpu_custom_call.1} parent=1 // pred_check
      _
    $region27: #{tpu_custom_call.1} parent=1 // pred_check_branch
      %87 = sbr.rel (0) target = $region29
    $region28: #{tpu_custom_call.1} parent=1 // pred_region
      %s89 = ssub.s32 512, 512
      %90 = vsyncadd [#allocation12], %s89
      %s91 = sshll.u32 [#allocation11], 4
      %s92 = int_to_ptr.vmem [resolvable:$true] %s91
      %97 = dma.hbm_to_vmem [thread:$0]  %s6, 512, %s92, [#allocation12], 128, 128, 8
    $region29: #{tpu_custom_call.1} parent=1 // pred_fallthru
      _
    // Predicated region
    $region30: #{tpu_custom_call.1} parent=1 // pred_check
      _
    $region31: #{tpu_custom_call.1} parent=1 // pred_check_branch
      %99 = sbr.rel (0) target = $region33
    $region32: #{tpu_custom_call.1} parent=1 // pred_region
      %s101 = ssub.s32 512, 512
      %102 = vsyncadd [#allocation12], %s101
      %s103 = sshll.u32 [#allocation13], 4
      %s104 = int_to_ptr.vmem [resolvable:$true] %s103
      %109 = dma.hbm_to_vmem [thread:$0]  %s7, 512, %s104, [#allocation12], 128, 128, 8
    $region33: #{tpu_custom_call.1} parent=1 // pred_fallthru
      _
    // Predicated region
    $region34: #{tpu_custom_call.1} parent=1 // pred_check
      _
    $region35: #{tpu_custom_call.1} parent=1 // pred_check_branch
      %111 = sbr.rel (0) target = $region37
    $region36: #{tpu_custom_call.1} parent=1 // pred_region
      _
    $region37: #{tpu_custom_call.1} parent=1 // pred_fallthru
      _
    // Predicated region
    $region38: #{tpu_custom_call.1} parent=1 // pred_check
      _
    $region39: #{tpu_custom_call.1} parent=1 // pred_check_branch
      %113 = sbr.rel (0) target = $region41
    $region40: #{tpu_custom_call.1} parent=1 // pred_region
      _
    $region41: #{tpu_custom_call.1} parent=1 // pred_fallthru
      _
    // Predicated region
    $region42: #{tpu_custom_call.1} parent=1 // pred_check
      _
    $region43: #{tpu_custom_call.1} parent=1 // pred_check_branch
      %115 = sbr.rel (0) target = $region45
    $region44: #{tpu_custom_call.1} parent=1 // pred_region
      _
    $region45: #{tpu_custom_call.1} parent=1 // pred_fallthru
      _
    // Predicated region
    $region46: #{tpu_custom_call.1} parent=1 // pred_check
      _
    $region47: #{tpu_custom_call.1} parent=1 // pred_check_branch
      %117 = sbr.rel (0) target = $region49
    $region48: #{tpu_custom_call.1} parent=1 // pred_region
      %118 = dma.done [#allocation3], 256
    $region49: #{tpu_custom_call.1} parent=1 // pred_fallthru
      _
    // Predicated region
    $region50: #{tpu_custom_call.1} parent=1 // pred_check
      _
    $region51: #{tpu_custom_call.1} parent=1 // pred_check_branch
      %120 = sbr.rel (0) target = $region53
    $region52: #{tpu_custom_call.1} parent=1 // pred_region
      %121 = dma.done [#allocation6], 256
    $region53: #{tpu_custom_call.1} parent=1 // pred_fallthru
      _
    // Predicated region
    $region54: #{tpu_custom_call.1} parent=1 // pred_check
      _
    $region55: #{tpu_custom_call.1} parent=1 // pred_check_branch
      %123 = sbr.rel (0) target = $region57
    $region56: #{tpu_custom_call.1} parent=1 // pred_region
      %124 = dma.done [#allocation6], 256
    $region57: #{tpu_custom_call.1} parent=1 // pred_fallthru
      _
    // Predicated region
    $region58: #{tpu_custom_call.1} parent=1 // pred_check
      _
    $region59: #{tpu_custom_call.1} parent=1 // pred_check_branch
      %126 = sbr.rel (0) target = $region61
    $region60: #{tpu_custom_call.1} parent=1 // pred_region
      %127 = dma.done [#allocation9], 512
    $region61: #{tpu_custom_call.1} parent=1 // pred_fallthru
      _
    // Predicated region
    $region62: #{tpu_custom_call.1} parent=1 // pred_check
      _
    $region63: #{tpu_custom_call.1} parent=1 // pred_check_branch
      %129 = sbr.rel (0) target = $region65
    $region64: #{tpu_custom_call.1} parent=1 // pred_region
      %130 = dma.done [#allocation9], 512
    $region65: #{tpu_custom_call.1} parent=1 // pred_fallthru
      _
    // Predicated region
    $region66: #{tpu_custom_call.1} parent=1 // pred_check
      _
    $region67: #{tpu_custom_call.1} parent=1 // pred_check_branch
      %132 = sbr.rel (0) target = $region69
    $region68: #{tpu_custom_call.1} parent=1 // pred_region
      %133 = dma.done [#allocation12], 512
    $region69: #{tpu_custom_call.1} parent=1 // pred_fallthru
      _
    // Predicated region
    $region70: #{tpu_custom_call.1} parent=1 // pred_check
      _
    $region71: #{tpu_custom_call.1} parent=1 // pred_check_branch
      %135 = sbr.rel (0) target = $region73
    $region72: #{tpu_custom_call.1} parent=1 // pred_region
      %136 = dma.done [#allocation12], 512
    $region73: #{tpu_custom_call.1} parent=1 // pred_fallthru
      _
    %v137 = vld [vmem:[#allocation2] sm:$0xff]
    %v138 = vld [vmem:[#allocation2 + $0x8] sm:$0xff]
    %v139 = vld [vmem:[#allocation5] sm:$0xff]
    %v140 = vld [vmem:[#allocation5 + $0x8] sm:$0xff]
    %v141 = vld [vmem:[#allocation8] sm:$0xff]
    %v142 = vld [vmem:[#allocation8 + $0x8] sm:$0xff]
    %v143 = vld [vmem:[#allocation8 + $0x10] sm:$0xff]
    %v144 = vld [vmem:[#allocation8 + $0x18] sm:$0xff]
    %v145 = vld [vmem:[%s4] sm:$0x1]
    %v147 = vlaneseq
    %v148 = vshrl.u32 %v147, 7
    %v149 = vsub.s32 0, %v148
    %v150 = vrot.slane %v145, %v149
    %vm152 = vcmask 261120
    %v154 = vsel %vm152, %v137, 0
    %v157 = vsel %vm152, %v139, 0
    %v160 = vsel %vm152, %v138, 0
    %v163 = vsel %vm152, %v140, 0
    %165 = vmatprep.subr.mxu0 0.0
    %166 = vmatpush1.msra.mxu0 %v141
    %167 = vmatprep.subr.mxu0 0.0
    %168 = vmatpush1.msra.mxu0 %v142
    %169 = vmatprep.subr.mxu0 0.0
    %170 = vmatpush1.msra.mxu0 %v143
    %171 = vmatprep.subr.mxu0 0.0
    %172 = vmatpush1.msra.mxu0 %v144
    %173 = vmatprep.subr.mxu0 0.0
    %174 = vmatpush1.msra.mxu0 0.0
    %175 = vmatprep.subr.mxu0 0.0
    %176 = vmatpush1.msra.mxu0 0.0
    %177 = vmatprep.subr.mxu0 0.0
    %178 = vmatpush1.msra.mxu0 0.0
    %179 = vmatprep.subr.mxu0 0.0
    %180 = vmatpush1.msra.mxu0 0.0
    %181 = vmatprep.subr.mxu0 0.0
    %182 = vmatpush1.msra.mxu0 0.0
    %183 = vmatprep.subr.mxu0 0.0
    %184 = vmatpush1.msra.mxu0 0.0
    %185 = vmatprep.subr.mxu0 0.0
    %186 = vmatpush1.msra.mxu0 0.0
    %187 = vmatprep.subr.mxu0 0.0
    %188 = vmatpush1.msra.mxu0 0.0
    %189 = vmatprep.subr.mxu0 0.0
    %190 = vmatpush1.msra.mxu0 0.0
    %191 = vmatprep.subr.mxu0 0.0
    %192 = vmatpush1.msra.mxu0 0.0
    %193 = vmatprep.subr.mxu0 0.0
    %194 = vmatpush1.msra.mxu0 0.0
    %195 = vmatprep.subr.mxu0 0.0
    %196 = vmatpush1.msra.mxu0 0.0
    %197 = vmatprep.subr.mxu0 0.0
    %198 = vmatpush1.msra.mxu0 0.0
    %199 = vmatprep.subr.mxu0 0.0
    %200 = vmatpush1.msra.mxu0 0.0
    %201 = vmatprep.subr.mxu0 0.0
    %202 = vmatpush1.msra.mxu0 0.0
    %203 = vmatprep.subr.mxu0 0.0
    %204 = vmatpush1.msra.mxu0 0.0
    %205 = vmatprep.subr.mxu0 0.0
    %206 = vmatpush1.msra.mxu0 0.0
    %207 = vmatprep.subr.mxu0 0.0
    %208 = vmatpush1.msra.mxu0 0.0
    %209 = vmatprep.subr.mxu0 0.0
    %210 = vmatpush1.msra.mxu0 0.0
    %211 = vmatprep.subr.mxu0 0.0
    %212 = vmatpush1.msra.mxu0 0.0
    %213 = vmatprep.subr.mxu0 0.0
    %214 = vmatpush1.msra.mxu0 0.0
    %215 = vmatprep.subr.mxu0 0.0
    %216 = vmatpush1.msra.mxu0 0.0
    %217 = vmatprep.subr.mxu0 0.0
    %218 = vmatpush1.msra.mxu0 0.0
    %219 = vmatprep.subr.mxu0 0.0
    %220 = vmatpush1.msra.mxu0 0.0
    %221 = vmatprep.subr.mxu0 0.0
    %222 = vmatpush1.msra.mxu0 0.0
    %223 = vmatprep.subr.mxu0 0.0
    %224 = vmatpush1.msra.mxu0 0.0
    %225 = vmatprep.subr.mxu0 0.0
    %226 = vmatpush1.msra.mxu0 0.0
    %227 = vmatprep.subr.mxu0 0.0
    %228 = vmatpush1.msra.mxu0 0.0
    %229 = vmatprep.mubr.f32.mxu0 0.0
    %230 = vmatmul.mubr.f32.gmra.mrb[0].mxu0 %v154
    %v231 = vpop.f32.mrb[0].mxu0
    %v232 = vadd.f32 %v150, %v231
    %v233 = vpop.f32.mrb[0].mxu0
    %234 = vmatprep.mubr.f32.mxu0 0.0
    %235 = vmatmul.mubr.f32.gmra.mrb[0].mxu0 %v157
    %v236 = vpop.f32.mrb[0].mxu0
    %v237 = vadd.f32 %v150, %v236
    %v238 = vpop.f32.mrb[0].mxu0
    %239 = vmatprep.mubr.f32.mxu0 0.0
    %240 = vmatmul.mubr.f32.gmra.mrb[0].mxu0 %v160
    %v241 = vpop.f32.mrb[0].mxu0
    %v242 = vadd.f32 %v150, %v241
    %v243 = vpop.f32.mrb[0].mxu0
    %244 = vmatprep.mubr.f32.mxu0 0.0
    %245 = vmatmul.mubr.f32.gmra.mrb[0].mxu0 %v163
    %v246 = vpop.f32.mrb[0].mxu0
    %v247 = vadd.f32 %v150, %v246
    %v248 = vpop.f32.mrb[0].mxu0
    %249 = vdwg.mxu0
    %v250 = vld [vmem:[#allocation10] sm:$0xff]
    %v251 = vld [vmem:[#allocation10 + $0x8] sm:$0xff]
    %v252 = vld [vmem:[#allocation10 + $0x10] sm:$0xff]
    %v253 = vld [vmem:[#allocation10 + $0x18] sm:$0xff]
    %258 = vrot.lane.b32.xlu0 %v250, 32
    %v259 = vpop.permute.xlu0 %258
    %260 = vrot.lane.b32.xlu0 %v251, 32
    %v261 = vpop.permute.xlu0 %260
    %262 = vrot.lane.b32.xlu0 %v252, 32
    %v263 = vpop.permute.xlu0 %262
    %264 = vrot.lane.b32.xlu0 %v253, 32
    %v265 = vpop.permute.xlu0 %264
    %v270 = vmul.f32 %v237, %v259
    %v271 = vmul.f32 %v237, %v261
    %v272 = vmul.f32 %v237, %v263
    %v273 = vmul.f32 %v237, %v265
    %v274 = vmul.f32 %v247, %v259
    %v275 = vmul.f32 %v247, %v261
    %v276 = vmul.f32 %v247, %v263
    %v277 = vmul.f32 %v247, %v265
    %278 = vrot.lane.b32.xlu0 %v250, 64
    %v279 = vpop.permute.xlu0 %278
    %280 = vrot.lane.b32.xlu0 %v251, 64
    %v281 = vpop.permute.xlu0 %280
    %282 = vrot.lane.b32.xlu0 %v252, 64
    %v283 = vpop.permute.xlu0 %282
    %284 = vrot.lane.b32.xlu0 %v253, 64
    %v285 = vpop.permute.xlu0 %284
    %v290 = vmul.f32 %v237, %v279
    %v291 = vmul.f32 %v237, %v281
    %v292 = vmul.f32 %v237, %v283
    %v293 = vmul.f32 %v237, %v285
    %v294 = vmul.f32 %v247, %v279
    %v295 = vmul.f32 %v247, %v281
    %v296 = vmul.f32 %v247, %v283
    %v297 = vmul.f32 %v247, %v285
    %v298 = vld [vmem:[#allocation7] sm:$0xff]
    %v299 = vld [vmem:[#allocation7 + $0x8] sm:$0xff]
    %304 = vrot.lane.b32.xlu0 %v270, 96
    %v305 = vpop.permute.xlu0 %304
    %306 = vrot.lane.b32.xlu0 %v271, 96
    %v307 = vpop.permute.xlu0 %306
    %308 = vrot.lane.b32.xlu0 %v272, 96
    %v309 = vpop.permute.xlu0 %308
    %310 = vrot.lane.b32.xlu0 %v273, 96
    %v311 = vpop.permute.xlu0 %310
    %v313 = vsel %vm152, %v232, 0
    %v315 = vsel %vm152, %v305, 0
    %v317 = vsel %vm152, %v307, 0
    %v319 = vsel %vm152, %v309, 0
    %v321 = vsel %vm152, %v311, 0
    %323 = vmatprep.subr.mxu0 0.0
    %324 = vmatpush1.xpose.msra.mxu0 %v315
    %325 = vmatprep.subr.mxu0 0.0
    %326 = vmatpush1.xpose.msra.mxu0 %v317
    %327 = vmatprep.subr.mxu0 0.0
    %328 = vmatpush1.xpose.msra.mxu0 %v319
    %329 = vmatprep.subr.mxu0 0.0
    %330 = vmatpush1.xpose.msra.mxu0 %v321
    %331 = vmatprep.subr.mxu0 0.0
    %332 = vmatpush1.xpose.msra.mxu0 0.0
    %333 = vmatprep.subr.mxu0 0.0
    %334 = vmatpush1.xpose.msra.mxu0 0.0
    %335 = vmatprep.subr.mxu0 0.0
    %336 = vmatpush1.xpose.msra.mxu0 0.0
    %337 = vmatprep.subr.mxu0 0.0
    %338 = vmatpush1.xpose.msra.mxu0 0.0
    %339 = vmatprep.subr.mxu0 0.0
    %340 = vmatpush1.xpose.msra.mxu0 0.0
    %341 = vmatprep.subr.mxu0 0.0
    %342 = vmatpush1.xpose.msra.mxu0 0.0
    %343 = vmatprep.subr.mxu0 0.0
    %344 = vmatpush1.xpose.msra.mxu0 0.0
    %345 = vmatprep.subr.mxu0 0.0
    %346 = vmatpush1.xpose.msra.mxu0 0.0
    %347 = vmatprep.subr.mxu0 0.0
    %348 = vmatpush1.xpose.msra.mxu0 0.0
    %349 = vmatprep.subr.mxu0 0.0
    %350 = vmatpush1.xpose.msra.mxu0 0.0
    %351 = vmatprep.subr.mxu0 0.0
    %352 = vmatpush1.xpose.msra.mxu0 0.0
    %353 = vmatprep.subr.mxu0 0.0
    %354 = vmatpush1.xpose.msra.mxu0 0.0
    %355 = vmatprep.subr.mxu0 0.0
    %356 = vmatpush1.xpose.msra.mxu0 0.0
    %357 = vmatprep.subr.mxu0 0.0
    %358 = vmatpush1.xpose.msra.mxu0 0.0
    %359 = vmatprep.subr.mxu0 0.0
    %360 = vmatpush1.xpose.msra.mxu0 0.0
    %361 = vmatprep.subr.mxu0 0.0
    %362 = vmatpush1.xpose.msra.mxu0 0.0
    %363 = vmatprep.subr.mxu0 0.0
    %364 = vmatpush1.xpose.msra.mxu0 0.0
    %365 = vmatprep.subr.mxu0 0.0
    %366 = vmatpush1.xpose.msra.mxu0 0.0
    %367 = vmatprep.subr.mxu0 0.0
    %368 = vmatpush1.xpose.msra.mxu0 0.0
    %369 = vmatprep.subr.mxu0 0.0
    %370 = vmatpush1.xpose.msra.mxu0 0.0
    %371 = vmatprep.subr.mxu0 0.0
    %372 = vmatpush1.xpose.msra.mxu0 0.0
    %373 = vmatprep.subr.mxu0 0.0
    %374 = vmatpush1.xpose.msra.mxu0 0.0
    %375 = vmatprep.subr.mxu0 0.0
    %376 = vmatpush1.xpose.msra.mxu0 0.0
    %377 = vmatprep.subr.mxu0 0.0
    %378 = vmatpush1.xpose.msra.mxu0 0.0
    %379 = vmatprep.subr.mxu0 0.0
    %380 = vmatpush1.xpose.msra.mxu0 0.0
    %381 = vmatprep.subr.mxu0 0.0
    %382 = vmatpush1.xpose.msra.mxu0 0.0
    %383 = vmatprep.subr.mxu0 0.0
    %384 = vmatpush1.xpose.msra.mxu0 0.0
    %385 = vmatprep.subr.mxu0 0.0
    %386 = vmatpush1.xpose.msra.mxu0 0.0
    %387 = vmatprep.mubr.f32.mxu0 0.0
    %388 = vmatmul.mubr.f32.gmra.mrb[0].mxu0 %v313
    %v389 = vpop.f32.mrb[0].mxu0
    %v390 = vadd.f32 %v298, %v389
    %v391 = vpop.f32.mrb[0].mxu0
    %392 = vdwg.mxu0
    %397 = vrot.lane.b32.xlu0 %v274, 96
    %v398 = vpop.permute.xlu0 %397
    %399 = vrot.lane.b32.xlu0 %v275, 96
    %v400 = vpop.permute.xlu0 %399
    %401 = vrot.lane.b32.xlu0 %v276, 96
    %v402 = vpop.permute.xlu0 %401
    %403 = vrot.lane.b32.xlu0 %v277, 96
    %v404 = vpop.permute.xlu0 %403
    %v406 = vsel %vm152, %v242, 0
    %v408 = vsel %vm152, %v398, 0
    %v410 = vsel %vm152, %v400, 0
    %v412 = vsel %vm152, %v402, 0
    %v414 = vsel %vm152, %v404, 0
    %416 = vmatprep.subr.mxu0 0.0
    %417 = vmatpush1.xpose.msra.mxu0 %v408
    %418 = vmatprep.subr.mxu0 0.0
    %419 = vmatpush1.xpose.msra.mxu0 %v410
    %420 = vmatprep.subr.mxu0 0.0
    %421 = vmatpush1.xpose.msra.mxu0 %v412
    %422 = vmatprep.subr.mxu0 0.0
    %423 = vmatpush1.xpose.msra.mxu0 %v414
    %424 = vmatprep.subr.mxu0 0.0
    %425 = vmatpush1.xpose.msra.mxu0 0.0
    %426 = vmatprep.subr.mxu0 0.0
    %427 = vmatpush1.xpose.msra.mxu0 0.0
    %428 = vmatprep.subr.mxu0 0.0
    %429 = vmatpush1.xpose.msra.mxu0 0.0
    %430 = vmatprep.subr.mxu0 0.0
    %431 = vmatpush1.xpose.msra.mxu0 0.0
    %432 = vmatprep.subr.mxu0 0.0
    %433 = vmatpush1.xpose.msra.mxu0 0.0
    %434 = vmatprep.subr.mxu0 0.0
    %435 = vmatpush1.xpose.msra.mxu0 0.0
    %436 = vmatprep.subr.mxu0 0.0
    %437 = vmatpush1.xpose.msra.mxu0 0.0
    %438 = vmatprep.subr.mxu0 0.0
    %439 = vmatpush1.xpose.msra.mxu0 0.0
    %440 = vmatprep.subr.mxu0 0.0
    %441 = vmatpush1.xpose.msra.mxu0 0.0
    %442 = vmatprep.subr.mxu0 0.0
    %443 = vmatpush1.xpose.msra.mxu0 0.0
    %444 = vmatprep.subr.mxu0 0.0
    %445 = vmatpush1.xpose.msra.mxu0 0.0
    %446 = vmatprep.subr.mxu0 0.0
    %447 = vmatpush1.xpose.msra.mxu0 0.0
    %448 = vmatprep.subr.mxu0 0.0
    %449 = vmatpush1.xpose.msra.mxu0 0.0
    %450 = vmatprep.subr.mxu0 0.0
    %451 = vmatpush1.xpose.msra.mxu0 0.0
    %452 = vmatprep.subr.mxu0 0.0
    %453 = vmatpush1.xpose.msra.mxu0 0.0
    %454 = vmatprep.subr.mxu0 0.0
    %455 = vmatpush1.xpose.msra.mxu0 0.0
    %456 = vmatprep.subr.mxu0 0.0
    %457 = vmatpush1.xpose.msra.mxu0 0.0
    %458 = vmatprep.subr.mxu0 0.0
    %459 = vmatpush1.xpose.msra.mxu0 0.0
    %460 = vmatprep.subr.mxu0 0.0
    %461 = vmatpush1.xpose.msra.mxu0 0.0
    %462 = vmatprep.subr.mxu0 0.0
    %463 = vmatpush1.xpose.msra.mxu0 0.0
    %464 = vmatprep.subr.mxu0 0.0
    %465 = vmatpush1.xpose.msra.mxu0 0.0
    %466 = vmatprep.subr.mxu0 0.0
    %467 = vmatpush1.xpose.msra.mxu0 0.0
    %468 = vmatprep.subr.mxu0 0.0
    %469 = vmatpush1.xpose.msra.mxu0 0.0
    %470 = vmatprep.subr.mxu0 0.0
    %471 = vmatpush1.xpose.msra.mxu0 0.0
    %472 = vmatprep.subr.mxu0 0.0
    %473 = vmatpush1.xpose.msra.mxu0 0.0
    %474 = vmatprep.subr.mxu0 0.0
    %475 = vmatpush1.xpose.msra.mxu0 0.0
    %476 = vmatprep.subr.mxu0 0.0
    %477 = vmatpush1.xpose.msra.mxu0 0.0
    %478 = vmatprep.subr.mxu0 0.0
    %479 = vmatpush1.xpose.msra.mxu0 0.0
    %480 = vmatprep.mubr.f32.mxu0 0.0
    %481 = vmatmul.mubr.f32.gmra.mrb[0].mxu0 %v406
    %v482 = vpop.f32.mrb[0].mxu0
    %v483 = vadd.f32 %v299, %v482
    %v484 = vpop.f32.mrb[0].mxu0
    %485 = vdwg.mxu0
    %v486 = vsel %vm152, %v390, -inf
    %487 = vmax.xlane.f32.xlu0 %v486
    %v488 = vpop.xlane.xlu0 %487
    %v489 = vsel %vm152, %v483, -inf
    %490 = vmax.xlane.f32.xlu0 %v489
    %v491 = vpop.xlane.xlu0 %490
    %v492 = vsub.f32 %v390, %v488
    %v493 = vsub.f32 %v483, %v491
    %v494 = vmul.f32 %v492, 1.442695
    %v495 = vpow.pop %v494
    %v496 = vmul.f32 %v493, 1.442695
    %v497 = vpow.pop %v496
    %v498 = vld [vmem:[#allocation11] sm:$0xff]
    %v499 = vld [vmem:[#allocation11 + $0x8] sm:$0xff]
    %v500 = vld [vmem:[#allocation11 + $0x10] sm:$0xff]
    %v501 = vld [vmem:[#allocation11 + $0x18] sm:$0xff]
    %v503 = vsel %vm152, %v495, 0
    %v506 = vsel %vm152, %v497, 0
    %508 = vmatprep.subr.mxu0 0.0
    %509 = vmatpush1.msra.mxu0 %v498
    %510 = vmatprep.subr.mxu0 0.0
    %511 = vmatpush1.msra.mxu0 %v499
    %512 = vmatprep.subr.mxu0 0.0
    %513 = vmatpush1.msra.mxu0 %v500
    %514 = vmatprep.subr.mxu0 0.0
    %515 = vmatpush1.msra.mxu0 %v501
    %516 = vmatprep.subr.mxu0 0.0
    %517 = vmatpush1.msra.mxu0 0.0
    %518 = vmatprep.subr.mxu0 0.0
    %519 = vmatpush1.msra.mxu0 0.0
    %520 = vmatprep.subr.mxu0 0.0
    %521 = vmatpush1.msra.mxu0 0.0
    %522 = vmatprep.subr.mxu0 0.0
    %523 = vmatpush1.msra.mxu0 0.0
    %524 = vmatprep.subr.mxu0 0.0
    %525 = vmatpush1.msra.mxu0 0.0
    %526 = vmatprep.subr.mxu0 0.0
    %527 = vmatpush1.msra.mxu0 0.0
    %528 = vmatprep.subr.mxu0 0.0
    %529 = vmatpush1.msra.mxu0 0.0
    %530 = vmatprep.subr.mxu0 0.0
    %531 = vmatpush1.msra.mxu0 0.0
    %532 = vmatprep.subr.mxu0 0.0
    %533 = vmatpush1.msra.mxu0 0.0
    %534 = vmatprep.subr.mxu0 0.0
    %535 = vmatpush1.msra.mxu0 0.0
    %536 = vmatprep.subr.mxu0 0.0
    %537 = vmatpush1.msra.mxu0 0.0
    %538 = vmatprep.subr.mxu0 0.0
    %539 = vmatpush1.msra.mxu0 0.0
    %540 = vmatprep.subr.mxu0 0.0
    %541 = vmatpush1.msra.mxu0 0.0
    %542 = vmatprep.subr.mxu0 0.0
    %543 = vmatpush1.msra.mxu0 0.0
    %544 = vmatprep.subr.mxu0 0.0
    %545 = vmatpush1.msra.mxu0 0.0
    %546 = vmatprep.subr.mxu0 0.0
    %547 = vmatpush1.msra.mxu0 0.0
    %548 = vmatprep.subr.mxu0 0.0
    %549 = vmatpush1.msra.mxu0 0.0
    %550 = vmatprep.subr.mxu0 0.0
    %551 = vmatpush1.msra.mxu0 0.0
    %552 = vmatprep.subr.mxu0 0.0
    %553 = vmatpush1.msra.mxu0 0.0
    %554 = vmatprep.subr.mxu0 0.0
    %555 = vmatpush1.msra.mxu0 0.0
    %556 = vmatprep.subr.mxu0 0.0
    %557 = vmatpush1.msra.mxu0 0.0
    %558 = vmatprep.subr.mxu0 0.0
    %559 = vmatpush1.msra.mxu0 0.0
    %560 = vmatprep.subr.mxu0 0.0
    %561 = vmatpush1.msra.mxu0 0.0
    %562 = vmatprep.subr.mxu0 0.0
    %563 = vmatpush1.msra.mxu0 0.0
    %564 = vmatprep.subr.mxu0 0.0
    %565 = vmatpush1.msra.mxu0 0.0
    %566 = vmatprep.subr.mxu0 0.0
    %567 = vmatpush1.msra.mxu0 0.0
    %568 = vmatprep.subr.mxu0 0.0
    %569 = vmatpush1.msra.mxu0 0.0
    %570 = vmatprep.subr.mxu0 0.0
    %571 = vmatpush1.msra.mxu0 0.0
    %572 = vmatprep.mubr.f32.mxu0 0.0
    %573 = vmatmul.mubr.f32.gmra.mrb[0].mxu0 %v503
    %v574 = vpop.f32.mrb[0].mxu0
    %v575 = vadd.f32 0.0, %v574
    %v576 = vpop.f32.mrb[0].mxu0
    %577 = vmatprep.mubr.f32.mxu0 0.0
    %578 = vmatmul.mubr.f32.gmra.mrb[0].mxu0 %v506
    %v579 = vpop.f32.mrb[0].mxu0
    %v580 = vadd.f32 0.0, %v579
    %v581 = vpop.f32.mrb[0].mxu0
    %582 = vdwg.mxu0
    %v583 = vrcp.pop %v575
    %v584 = vrcp.pop %v580
    %v585 = vmul.f32 %v495, %v583
    %v586 = vmul.f32 %v497, %v584
    %587 = vst.msk [vmem:[#allocation15] sm:$0xff] %vm152, %v585
    %588 = vst.msk [vmem:[#allocation15 + $0x8] sm:$0xff] %vm152, %v586
    %593 = vrot.lane.b32.xlu0 %v290, 64
    %v594 = vpop.permute.xlu0 %593
    %595 = vrot.lane.b32.xlu0 %v291, 64
    %v596 = vpop.permute.xlu0 %595
    %597 = vrot.lane.b32.xlu0 %v292, 64
    %v598 = vpop.permute.xlu0 %597
    %599 = vrot.lane.b32.xlu0 %v293, 64
    %v600 = vpop.permute.xlu0 %599
    %v606 = vsel %vm152, %v585, 0
    %608 = vmatprep.subr.mxu0 0.0
    %609 = vmatpush1.msra.mxu0 %v594
    %610 = vmatprep.subr.mxu0 0.0
    %611 = vmatpush1.msra.mxu0 %v596
    %612 = vmatprep.subr.mxu0 0.0
    %613 = vmatpush1.msra.mxu0 %v598
    %614 = vmatprep.subr.mxu0 0.0
    %615 = vmatpush1.msra.mxu0 %v600
    %616 = vmatprep.subr.mxu0 0.0
    %617 = vmatpush1.msra.mxu0 0.0
    %618 = vmatprep.subr.mxu0 0.0
    %619 = vmatpush1.msra.mxu0 0.0
    %620 = vmatprep.subr.mxu0 0.0
    %621 = vmatpush1.msra.mxu0 0.0
    %622 = vmatprep.subr.mxu0 0.0
    %623 = vmatpush1.msra.mxu0 0.0
    %624 = vmatprep.subr.mxu0 0.0
    %625 = vmatpush1.msra.mxu0 0.0
    %626 = vmatprep.subr.mxu0 0.0
    %627 = vmatpush1.msra.mxu0 0.0
    %628 = vmatprep.subr.mxu0 0.0
    %629 = vmatpush1.msra.mxu0 0.0
    %630 = vmatprep.subr.mxu0 0.0
    %631 = vmatpush1.msra.mxu0 0.0
    %632 = vmatprep.subr.mxu0 0.0
    %633 = vmatpush1.msra.mxu0 0.0
    %634 = vmatprep.subr.mxu0 0.0
    %635 = vmatpush1.msra.mxu0 0.0
    %636 = vmatprep.subr.mxu0 0.0
    %637 = vmatpush1.msra.mxu0 0.0
    %638 = vmatprep.subr.mxu0 0.0
    %639 = vmatpush1.msra.mxu0 0.0
    %640 = vmatprep.subr.mxu0 0.0
    %641 = vmatpush1.msra.mxu0 0.0
    %642 = vmatprep.subr.mxu0 0.0
    %643 = vmatpush1.msra.mxu0 0.0
    %644 = vmatprep.subr.mxu0 0.0
    %645 = vmatpush1.msra.mxu0 0.0
    %646 = vmatprep.subr.mxu0 0.0
    %647 = vmatpush1.msra.mxu0 0.0
    %648 = vmatprep.subr.mxu0 0.0
    %649 = vmatpush1.msra.mxu0 0.0
    %650 = vmatprep.subr.mxu0 0.0
    %651 = vmatpush1.msra.mxu0 0.0
    %652 = vmatprep.subr.mxu0 0.0
    %653 = vmatpush1.msra.mxu0 0.0
    %654 = vmatprep.subr.mxu0 0.0
    %655 = vmatpush1.msra.mxu0 0.0
    %656 = vmatprep.subr.mxu0 0.0
    %657 = vmatpush1.msra.mxu0 0.0
    %658 = vmatprep.subr.mxu0 0.0
    %659 = vmatpush1.msra.mxu0 0.0
    %660 = vmatprep.subr.mxu0 0.0
    %661 = vmatpush1.msra.mxu0 0.0
    %662 = vmatprep.subr.mxu0 0.0
    %663 = vmatpush1.msra.mxu0 0.0
    %664 = vmatprep.subr.mxu0 0.0
    %665 = vmatpush1.msra.mxu0 0.0
    %666 = vmatprep.subr.mxu0 0.0
    %667 = vmatpush1.msra.mxu0 0.0
    %668 = vmatprep.subr.mxu0 0.0
    %669 = vmatpush1.msra.mxu0 0.0
    %670 = vmatprep.subr.mxu0 0.0
    %671 = vmatpush1.msra.mxu0 0.0
    %672 = vmatprep.mubr.f32.mxu0 0.0
    %673 = vmatmul.mubr.f32.gmra.mrb[0].mxu0 %v606
    %v674 = vpop.f32.mrb[0].mxu0
    %v675 = vadd.f32 0.0, %v674
    %v676 = vpop.f32.mrb[0].mxu0
    %677 = vdwg.mxu0
    %682 = vrot.lane.b32.xlu0 %v294, 64
    %v683 = vpop.permute.xlu0 %682
    %684 = vrot.lane.b32.xlu0 %v295, 64
    %v685 = vpop.permute.xlu0 %684
    %686 = vrot.lane.b32.xlu0 %v296, 64
    %v687 = vpop.permute.xlu0 %686
    %688 = vrot.lane.b32.xlu0 %v297, 64
    %v689 = vpop.permute.xlu0 %688
    %v695 = vsel %vm152, %v586, 0
    %697 = vmatprep.subr.mxu0 0.0
    %698 = vmatpush1.msra.mxu0 %v683
    %699 = vmatprep.subr.mxu0 0.0
    %700 = vmatpush1.msra.mxu0 %v685
    %701 = vmatprep.subr.mxu0 0.0
    %702 = vmatpush1.msra.mxu0 %v687
    %703 = vmatprep.subr.mxu0 0.0
    %704 = vmatpush1.msra.mxu0 %v689
    %705 = vmatprep.subr.mxu0 0.0
    %706 = vmatpush1.msra.mxu0 0.0
    %707 = vmatprep.subr.mxu0 0.0
    %708 = vmatpush1.msra.mxu0 0.0
    %709 = vmatprep.subr.mxu0 0.0
    %710 = vmatpush1.msra.mxu0 0.0
    %711 = vmatprep.subr.mxu0 0.0
    %712 = vmatpush1.msra.mxu0 0.0
    %713 = vmatprep.subr.mxu0 0.0
    %714 = vmatpush1.msra.mxu0 0.0
    %715 = vmatprep.subr.mxu0 0.0
    %716 = vmatpush1.msra.mxu0 0.0
    %717 = vmatprep.subr.mxu0 0.0
    %718 = vmatpush1.msra.mxu0 0.0
    %719 = vmatprep.subr.mxu0 0.0
    %720 = vmatpush1.msra.mxu0 0.0
    %721 = vmatprep.subr.mxu0 0.0
    %722 = vmatpush1.msra.mxu0 0.0
    %723 = vmatprep.subr.mxu0 0.0
    %724 = vmatpush1.msra.mxu0 0.0
    %725 = vmatprep.subr.mxu0 0.0
    %726 = vmatpush1.msra.mxu0 0.0
    %727 = vmatprep.subr.mxu0 0.0
    %728 = vmatpush1.msra.mxu0 0.0
    %729 = vmatprep.subr.mxu0 0.0
    %730 = vmatpush1.msra.mxu0 0.0
    %731 = vmatprep.subr.mxu0 0.0
    %732 = vmatpush1.msra.mxu0 0.0
    %733 = vmatprep.subr.mxu0 0.0
    %734 = vmatpush1.msra.mxu0 0.0
    %735 = vmatprep.subr.mxu0 0.0
    %736 = vmatpush1.msra.mxu0 0.0
    %737 = vmatprep.subr.mxu0 0.0
    %738 = vmatpush1.msra.mxu0 0.0
    %739 = vmatprep.subr.mxu0 0.0
    %740 = vmatpush1.msra.mxu0 0.0
    %741 = vmatprep.subr.mxu0 0.0
    %742 = vmatpush1.msra.mxu0 0.0
    %743 = vmatprep.subr.mxu0 0.0
    %744 = vmatpush1.msra.mxu0 0.0
    %745 = vmatprep.subr.mxu0 0.0
    %746 = vmatpush1.msra.mxu0 0.0
    %747 = vmatprep.subr.mxu0 0.0
    %748 = vmatpush1.msra.mxu0 0.0
    %749 = vmatprep.subr.mxu0 0.0
    %750 = vmatpush1.msra.mxu0 0.0
    %751 = vmatprep.subr.mxu0 0.0
    %752 = vmatpush1.msra.mxu0 0.0
    %753 = vmatprep.subr.mxu0 0.0
    %754 = vmatpush1.msra.mxu0 0.0
    %755 = vmatprep.subr.mxu0 0.0
    %756 = vmatpush1.msra.mxu0 0.0
    %757 = vmatprep.subr.mxu0 0.0
    %758 = vmatpush1.msra.mxu0 0.0
    %759 = vmatprep.subr.mxu0 0.0
    %760 = vmatpush1.msra.mxu0 0.0
    %761 = vmatprep.mubr.f32.mxu0 0.0
    %762 = vmatmul.mubr.f32.gmra.mrb[0].mxu0 %v695
    %v763 = vpop.f32.mrb[0].mxu0
    %v764 = vadd.f32 0.0, %v763
    %v765 = vpop.f32.mrb[0].mxu0
    %766 = vdwg.mxu0
    %v767 = vld [vmem:[#allocation13] sm:$0xff]
    %v768 = vld [vmem:[#allocation13 + $0x8] sm:$0xff]
    %v769 = vld [vmem:[#allocation13 + $0x10] sm:$0xff]
    %v770 = vld [vmem:[#allocation13 + $0x18] sm:$0xff]
    %v771 = vld [vmem:[%s8] sm:$0x1]
    %v773 = vlaneseq
    %v774 = vshrl.u32 %v773, 7
    %v775 = vsub.s32 0, %v774
    %v776 = vrot.slane %v771, %v775
    %v779 = vsel %vm152, %v675, 0
    %v782 = vsel %vm152, %v764, 0
    %784 = vmatprep.subr.mxu0 0.0
    %785 = vmatpush1.msra.mxu0 %v767
    %786 = vmatprep.subr.mxu0 0.0
    %787 = vmatpush1.msra.mxu0 %v768
    %788 = vmatprep.subr.mxu0 0.0
    %789 = vmatpush1.msra.mxu0 %v769
    %790 = vmatprep.subr.mxu0 0.0
    %791 = vmatpush1.msra.mxu0 %v770
    %792 = vmatprep.subr.mxu0 0.0
    %793 = vmatpush1.msra.mxu0 0.0
    %794 = vmatprep.subr.mxu0 0.0
    %795 = vmatpush1.msra.mxu0 0.0
    %796 = vmatprep.subr.mxu0 0.0
    %797 = vmatpush1.msra.mxu0 0.0
    %798 = vmatprep.subr.mxu0 0.0
    %799 = vmatpush1.msra.mxu0 0.0
    %800 = vmatprep.subr.mxu0 0.0
    %801 = vmatpush1.msra.mxu0 0.0
    %802 = vmatprep.subr.mxu0 0.0
    %803 = vmatpush1.msra.mxu0 0.0
    %804 = vmatprep.subr.mxu0 0.0
    %805 = vmatpush1.msra.mxu0 0.0
    %806 = vmatprep.subr.mxu0 0.0
    %807 = vmatpush1.msra.mxu0 0.0
    %808 = vmatprep.subr.mxu0 0.0
    %809 = vmatpush1.msra.mxu0 0.0
    %810 = vmatprep.subr.mxu0 0.0
    %811 = vmatpush1.msra.mxu0 0.0
    %812 = vmatprep.subr.mxu0 0.0
    %813 = vmatpush1.msra.mxu0 0.0
    %814 = vmatprep.subr.mxu0 0.0
    %815 = vmatpush1.msra.mxu0 0.0
    %816 = vmatprep.subr.mxu0 0.0
    %817 = vmatpush1.msra.mxu0 0.0
    %818 = vmatprep.subr.mxu0 0.0
    %819 = vmatpush1.msra.mxu0 0.0
    %820 = vmatprep.subr.mxu0 0.0
    %821 = vmatpush1.msra.mxu0 0.0
    %822 = vmatprep.subr.mxu0 0.0
    %823 = vmatpush1.msra.mxu0 0.0
    %824 = vmatprep.subr.mxu0 0.0
    %825 = vmatpush1.msra.mxu0 0.0
    %826 = vmatprep.subr.mxu0 0.0
    %827 = vmatpush1.msra.mxu0 0.0
    %828 = vmatprep.subr.mxu0 0.0
    %829 = vmatpush1.msra.mxu0 0.0
    %830 = vmatprep.subr.mxu0 0.0
    %831 = vmatpush1.msra.mxu0 0.0
    %832 = vmatprep.subr.mxu0 0.0
    %833 = vmatpush1.msra.mxu0 0.0
    %834 = vmatprep.subr.mxu0 0.0
    %835 = vmatpush1.msra.mxu0 0.0
    %836 = vmatprep.subr.mxu0 0.0
    %837 = vmatpush1.msra.mxu0 0.0
    %838 = vmatprep.subr.mxu0 0.0
    %839 = vmatpush1.msra.mxu0 0.0
    %840 = vmatprep.subr.mxu0 0.0
    %841 = vmatpush1.msra.mxu0 0.0
    %842 = vmatprep.subr.mxu0 0.0
    %843 = vmatpush1.msra.mxu0 0.0
    %844 = vmatprep.subr.mxu0 0.0
    %845 = vmatpush1.msra.mxu0 0.0
    %846 = vmatprep.subr.mxu0 0.0
    %847 = vmatpush1.msra.mxu0 0.0
    %848 = vmatprep.mubr.f32.mxu0 0.0
    %849 = vmatmul.mubr.f32.gmra.mrb[0].mxu0 %v779
    %v850 = vpop.f32.mrb[0].mxu0
    %v851 = vadd.f32 %v776, %v850
    %v852 = vpop.f32.mrb[0].mxu0
    %853 = vmatprep.mubr.f32.mxu0 0.0
    %854 = vmatmul.mubr.f32.gmra.mrb[0].mxu0 %v782
    %v855 = vpop.f32.mrb[0].mxu0
    %v856 = vadd.f32 %v776, %v855
    %v857 = vpop.f32.mrb[0].mxu0
    %858 = vdwg.mxu0
    %v859 = vadd.f32 %v851, %v137
    %v860 = vadd.f32 %v856, %v138
    %v861 = vsel %vm152, %v859, 0.0
    %862 = vadd.xlane.f32.xlu0 %v861
    %v863 = vpop.xlane.xlu0 %862
    %v864 = vsel %vm152, %v860, 0.0
    %865 = vadd.xlane.f32.xlu0 %v864
    %v866 = vpop.xlane.xlu0 %865
    %v867 = vrcp.pop 32.0
    %v868 = vmul.f32 %v863, %v867
    %v869 = vmul.f32 %v866, %v867
    %v870 = vsub.f32 %v859, %v868
    %v871 = vsub.f32 %v860, %v869
    %v872 = vmul.f32 %v870, %v870
    %v873 = vmul.f32 %v871, %v871
    %v874 = vsel %vm152, %v872, 0.0
    %875 = vadd.xlane.f32.xlu0 %v874
    %v876 = vpop.xlane.xlu0 %875
    %v877 = vsel %vm152, %v873, 0.0
    %878 = vadd.xlane.f32.xlu0 %v877
    %v879 = vpop.xlane.xlu0 %878
    %v880 = vmul.f32 %v876, %v867
    %v881 = vmul.f32 %v879, %v867
    %v882 = vadd.f32 %v880, 1e-05
    %v883 = vadd.f32 %v881, 1e-05
    %v884 = vrsqrt.pop %v882
    %v885 = vrsqrt.pop %v883
    %v886 = vmul.f32 %v870, %v884
    %v887 = vmul.f32 %v871, %v885
    %v888 = vld [vmem:[%s9] sm:$0x1]
    %v890 = vlaneseq
    %v891 = vshrl.u32 %v890, 7
    %v892 = vsub.s32 0, %v891
    %v893 = vrot.slane %v888, %v892
    %v895 = vmul.f32 %v886, %v893
    %v896 = vmul.f32 %v887, %v893
    %v897 = vld [vmem:[%s10] sm:$0x1]
    %v899 = vlaneseq
    %v900 = vshrl.u32 %v899, 7
    %v901 = vsub.s32 0, %v900
    %v902 = vrot.slane %v897, %v901
    %v904 = vadd.f32 %v895, %v902
    %v905 = vadd.f32 %v896, %v902
    %906 = vst.msk [vmem:[#allocation14] sm:$0xff] %vm152, %v904
    %907 = vst.msk [vmem:[#allocation14 + $0x8] sm:$0xff] %vm152, %v905
    // Predicated region
    $region74: #{tpu_custom_call.1} parent=1 // pred_check
      _
    $region75: #{tpu_custom_call.1} parent=1 // pred_check_branch
      %909 = sbr.rel (0) target = $region77
    $region76: #{tpu_custom_call.1} parent=1 // pred_region
      %s911 = ssub.s32 256, 256
      %912 = vsyncadd [#allocation4], %s911
      %s913 = sshll.u32 [#allocation14], 4
      %s914 = int_to_ptr.vmem [resolvable:$true] %s913
      %919 = dma.vmem_to_hbm [thread:$0]  %s914, 256, %s11, [#allocation4], 128, 128, 8
    $region77: #{tpu_custom_call.1} parent=1 // pred_fallthru
      _
    // Predicated region
    $region78: #{tpu_custom_call.1} parent=1 // pred_check
      _
    $region79: #{tpu_custom_call.1} parent=1 // pred_check_branch
      %921 = sbr.rel (0) target = $region81
    $region80: #{tpu_custom_call.1} parent=1 // pred_region
      %s923 = ssub.s32 256, 256
      %924 = vsyncadd [#allocation16], %s923
      %s925 = sshll.u32 [#allocation15], 4
      %s926 = int_to_ptr.vmem [resolvable:$true] %s925
      %931 = dma.vmem_to_hbm [thread:$0]  %s926, 256, %s12, [#allocation16], 128, 128, 8
    $region81: #{tpu_custom_call.1} parent=1 // pred_fallthru
      _
    // Predicated region
    $region82: #{tpu_custom_call.1} parent=1 // pred_check
      _
    $region83: #{tpu_custom_call.1} parent=1 // pred_check_branch
      %933 = sbr.rel (0) target = $region85
    $region84: #{tpu_custom_call.1} parent=1 // pred_region
      %934 = dma.done [#allocation4], 256
    $region85: #{tpu_custom_call.1} parent=1 // pred_fallthru
      _
    // Predicated region
    $region86: #{tpu_custom_call.1} parent=1 // pred_check
      _
    $region87: #{tpu_custom_call.1} parent=1 // pred_check_branch
      %936 = sbr.rel (0) target = $region89
    $region88: #{tpu_custom_call.1} parent=1 // pred_region
      %937 = dma.done [#allocation16], 256
    $region89: #{tpu_custom_call.1} parent=1 // pred_fallthru
      _
    %938 = vsyncpa [#allocation3], 1
    %939 = vsyncpa [#allocation6], 1
    %940 = vsyncpa [#allocation9], 1
    %941 = vsyncpa [#allocation12], 1
    %942 = vsyncpa [#allocation4], 1
    %943 = vsyncpa [#allocation16], 1

</llo_original>
